<compile_context>
chip_gen: v7x
topology: tpu7x:2x2x1
jax: 0.10.0
libtpu: 0.0.40
codegen_flags: <defaults>
</compile_context>

<pallas_src>
import jax
import jax.numpy as jnp
from jax.experimental import pallas as pl
from jax.experimental.pallas import tpu as pltpu


def _round_up(x, m):
    return ((x + m - 1) // m) * m


def _make_combination_kernel(num_models):
    """o = concat(x_0..x_{M-1}, axis=-1) @ W + b   (eval-mode dropout = identity)."""

    def kernel(*refs):
        x_refs = refs[:num_models]
        w_ref = refs[num_models]
        b_ref = refs[num_models + 1]
        o_ref = refs[num_models + 2]

        # Dropout(p=0.1) is the identity in eval/inference mode.
        # TODO(synk): training-mode dropout would build the keep-mask in-kernel
        # via pltpu.prng_seed + pltpu.prng_random_bits.
        x_cat = jnp.concatenate([x_refs[m][...] for m in range(num_models)],
                                axis=-1)                       # [tb, M*Cin] (VMEM)
        acc = jnp.dot(x_cat, w_ref[...],
                      preferred_element_type=jnp.float32)      # single MXU matmul
        acc = acc + b_ref[...].astype(jnp.float32)             # f32 epilogue
        o_ref[...] = acc.astype(o_ref.dtype)

    return kernel


def prepare_combination_params(weight, bias, num_models, weight_dtype=None):
    """One-time parameter prep (hoisted out of the per-call path).

    weight: [num_classes, num_models*num_classes]  (PyTorch Linear layout)
    bias:   [num_classes]
    Returns (w_stacked, b_row, num_classes) with
      w_stacked: [num_models*num_classes, num_classes]  (transposed, stacked)
      b_row:     [1, num_classes] f32
    """
    num_classes = weight.shape[0]
    assert weight.shape[1] == num_models * num_classes
    w = weight.T                                   # [M*C, C]
    if weight_dtype is not None:
        w = w.astype(weight_dtype)
    b = bias.astype(jnp.float32).reshape(1, num_classes)
    return w, b, num_classes


def simple_combination_layer(model_outputs, params, *, block_b=16384,
                             out_dtype=None):
    """Forward pass of SimpleCombinationLayer (inference mode).

    model_outputs: list of [B, num_classes] arrays (length num_models)
    params:        output of prepare_combination_params
    returns:       [B, num_classes]
    """
    w, b, num_classes = params
    num_models = len(model_outputs)
    B, c_in = model_outputs[0].shape
    assert w.shape == (num_models * c_in, num_classes)
    if out_dtype is None:
        out_dtype = model_outputs[0].dtype

    # --- batch tile selection ---------------------------------------------
    # Large tiles amortise the ~0.35 us per-grid-step overhead; VMEM footprint
    # is tiny because both input (M*c_in) and output (num_classes) lane widths
    # are small and the output is unpadded.
    tb = min(block_b, B)
    if tb < B:
        tb = max(16, (tb // 16) * 16)        # sublane-friendly for f32/bf16
    elif B >= 4096:
        # Split into >=2 batch tiles so the "parallel" axis can actually be
        # sharded across v7x's two TensorCores (single-TC v5e/v6e unaffected).
        tb = max(16, _round_up(pl.cdiv(B, 2), 16))
    grid = (pl.cdiv(B, tb),)

    x_specs = [pl.BlockSpec((tb, c_in), lambda i: (i, 0))
               for _ in range(num_models)]
    w_spec = pl.BlockSpec((num_models * c_in, num_classes), lambda i: (0, 0))
    b_spec = pl.BlockSpec((1, num_classes), lambda i: (0, 0))
    out_spec = pl.BlockSpec((tb, num_classes), lambda i: (i, 0))

    return pl.pallas_call(
        _make_combination_kernel(num_models),
        out_shape=jax.ShapeDtypeStruct((B, num_classes), out_dtype),
        grid_spec=pltpu.PrefetchScalarGridSpec(
            num_scalar_prefetch=0,
            grid=grid,
            in_specs=x_specs + [w_spec, b_spec],
            out_specs=out_spec,
        ),
        compiler_params=pltpu.CompilerParams(
            dimension_semantics=("parallel",)),   # batch axis: megacore on v7x
    )(*model_outputs, w, b)


if __name__ == "__main__":
    num_models = 3
    num_classes = 10
    batch = 8

    key = jax.random.PRNGKey(0)
    k_outs, k_w, k_b = jax.random.split(key, 3)

    # Synthetic per-model logits (the list the module receives).
    out_keys = jax.random.split(k_outs, num_models)
    model_outputs = [
        jax.random.normal(out_keys[m], (batch, num_classes), dtype=jnp.float32)
        for m in range(num_models)
    ]

    # Deterministic Linear(num_models*num_classes, num_classes) parameters,
    # mimicking PyTorch's uniform(-1/sqrt(fan_in), 1/sqrt(fan_in)) init.
    fan_in = num_models * num_classes
    bound = 1.0 / (fan_in ** 0.5)
    weight = jax.random.uniform(k_w, (num_classes, fan_in),
                                minval=-bound, maxval=bound, dtype=jnp.float32)
    bias = jax.random.uniform(k_b, (num_classes,),
                              minval=-bound, maxval=bound, dtype=jnp.float32)

    # Pure-JAX reference (eval mode => dropout is identity).
    x_cat = jnp.concatenate(model_outputs, axis=1)
    y_ref = x_cat @ weight.T + bias

    params = prepare_combination_params(weight, bias, num_models)

    # Single-tile path (B <= block_b -> one full-extent block).
    y = simple_combination_layer(model_outputs, params)
    y = jax.block_until_ready(y)
    assert y.shape == (batch, num_classes)
    assert jnp.allclose(y, y_ref, atol=1e-4, rtol=1e-4)

    # Multi-tile path with a ragged final tile (exercises masked writeback).
    batch2 = 40
    mo2 = [jax.random.normal(k, (batch2, num_classes), dtype=jnp.float32)
           for k in jax.random.split(k_outs, num_models)]
    y2_ref = jnp.concatenate(mo2, axis=1) @ weight.T + bias
    y2 = simple_combination_layer(mo2, params, block_b=16)
    y2 = jax.block_until_ready(y2)
    assert y2.shape == (batch2, num_classes)
    assert jnp.allclose(y2, y2_ref, atol=1e-4, rtol=1e-4)

    print("KERNEL_OK")
</pallas_src>

<mosaic_0001>
module attributes {stable_mosaic.version = 11 : i64} {
  func.func @kernel(%arg0: i32, %arg1: memref<8x10xf32, #tpu.memory_space<vmem>>, %arg2: memref<8x10xf32, #tpu.memory_space<vmem>>, %arg3: memref<8x10xf32, #tpu.memory_space<vmem>>, %arg4: memref<30x10xf32, #tpu.memory_space<vmem>>, %arg5: memref<1x10xf32, #tpu.memory_space<vmem>>, %arg6: memref<8x10xf32, #tpu.memory_space<vmem>>) attributes {dimension_semantics = [#tpu.dimension_semantics<parallel>], iteration_bounds = array<i64: 1>, scalar_prefetch = 0 : i64, scratch_operands = 0 : i64, tpu.core_type = #tpu.core_type<tc>, window_params = [{transform_indices = @transform_0, window_bounds = array<i64: 8, 10>}, {transform_indices = @transform_1, window_bounds = array<i64: 8, 10>}, {transform_indices = @transform_2, window_bounds = array<i64: 8, 10>}, {pipeline_mode = #tpu.pipeline_mode<synchronous>, transform_indices = @transform_3, window_bounds = array<i64: 30, 10>}, {pipeline_mode = #tpu.pipeline_mode<synchronous>, transform_indices = @transform_4, window_bounds = array<i64: 1, 10>}, {transform_indices = @transform_5, window_bounds = array<i64: 8, 10>}]} {
    %c0 = arith.constant 0 : index
    %c0_0 = arith.constant 0 : index
    %0 = vector.load %arg1[%c0, %c0_0] : memref<8x10xf32, #tpu.memory_space<vmem>>, vector<8x10xf32>
    %c0_1 = arith.constant 0 : index
    %c0_2 = arith.constant 0 : index
    %1 = vector.load %arg2[%c0_1, %c0_2] : memref<8x10xf32, #tpu.memory_space<vmem>>, vector<8x10xf32>
    %c0_3 = arith.constant 0 : index
    %c0_4 = arith.constant 0 : index
    %2 = vector.load %arg3[%c0_3, %c0_4] : memref<8x10xf32, #tpu.memory_space<vmem>>, vector<8x10xf32>
    %3 = tpu.concatenate %0, %1, %2 in 1 : vector<8x10xf32>, vector<8x10xf32>, vector<8x10xf32> -> vector<8x30xf32>
    %c0_5 = arith.constant 0 : index
    %c0_6 = arith.constant 0 : index
    %4 = vector.load %arg4[%c0_5, %c0_6] : memref<30x10xf32, #tpu.memory_space<vmem>>, vector<30x10xf32>
    %cst = arith.constant dense<0.000000e+00> : vector<8x10xf32>
    %5 = tpu.matmul %3, %4, %cst {dimension_numbers = #tpu.dot_dimension_numbers<[1], [0], [0], [1], [0, 0, 1, 1], [], []>} : vector<8x30xf32>, vector<30x10xf32>, vector<8x10xf32> -> vector<8x10xf32>
    %c0_7 = arith.constant 0 : index
    %c0_8 = arith.constant 0 : index
    %6 = vector.load %arg5[%c0_7, %c0_8] : memref<1x10xf32, #tpu.memory_space<vmem>>, vector<1x10xf32>
    %7 = vector.broadcast %6 : vector<1x10xf32> to vector<8x10xf32>
    %8 = arith.addf %5, %7 : vector<8x10xf32>
    %c0_9 = arith.constant 0 : index
    %c0_10 = arith.constant 0 : index
    %9 = vector.load %arg6[%c0_9, %c0_10] : memref<8x10xf32, #tpu.memory_space<vmem>>, vector<8x10xf32>
    tpu.vector_store %arg6[%c0_9, %c0_10], %8 {strides = array<i32>} : memref<8x10xf32, #tpu.memory_space<vmem>>, vector<8x10xf32>,
    return
  }
  func.func @transform_0(%arg0: i32) -> (i32, i32) {
    %c0_i32 = arith.constant 0 : i32
    %c0_i32_0 = arith.constant 0 : i32
    return %arg0, %c0_i32 : i32, i32
  }
  func.func @transform_1(%arg0: i32) -> (i32, i32) {
    %c0_i32 = arith.constant 0 : i32
    %c0_i32_0 = arith.constant 0 : i32
    return %arg0, %c0_i32 : i32, i32
  }
  func.func @transform_2(%arg0: i32) -> (i32, i32) {
    %c0_i32 = arith.constant 0 : i32
    %c0_i32_0 = arith.constant 0 : i32
    return %arg0, %c0_i32 : i32, i32
  }
  func.func @transform_3(%arg0: i32) -> (i32, i32) {
    %c0_i32 = arith.constant 0 : i32
    %c0_i32_0 = arith.constant 0 : i32
    %c0_i32_1 = arith.constant 0 : i32
    return %c0_i32, %c0_i32_0 : i32, i32
  }
  func.func @transform_4(%arg0: i32) -> (i32, i32) {
    %c0_i32 = arith.constant 0 : i32
    %c0_i32_0 = arith.constant 0 : i32
    %c0_i32_1 = arith.constant 0 : i32
    return %c0_i32, %c0_i32_0 : i32, i32
  }
  func.func @transform_5(%arg0: i32) -> (i32, i32) {
    %c0_i32 = arith.constant 0 : i32
    %c0_i32_0 = arith.constant 0 : i32
    return %arg0, %c0_i32 : i32, i32
  }
}

</mosaic_0001>

<llo_original>
// kernel: tpu_custom_call.1
$region0: #{tpu_custom_call.1}
  #allocation0 [shape = 'u32[]', space=smem, size = 0x4, offset = 0x4, fixed_abs, tag = 'smem constant byte address 0x4 - core index']
  #allocation1 [shape = 'u32[144,128]{1,0:T(1,128)}', space=vmem, size = 0x12000, scoped, tag = 'internal scratch']
  %s0 = inlined_call_operand.vmem [shape: f32[8,10], index: 0, kind: input, shape index: {}]
  %s1 = inlined_call_operand.vmem [shape: f32[8,10], index: 1, kind: input, shape index: {}]
  %s2 = inlined_call_operand.vmem [shape: f32[8,10], index: 2, kind: input, shape index: {}]
  %s3 = inlined_call_operand.vmem [shape: f32[30,10], index: 3, kind: input, shape index: {}]
  %s4 = inlined_call_operand.vmem [shape: f32[1,10], index: 4, kind: input, shape index: {}]
  %s5 = inlined_call_operand.hbm [shape: f32[8,10], index: 5, kind: output, shape index: {}]
  %s6 = sld [smem:[#allocation0]]
  $region30: #{tpu_custom_call.1} parent=0
    _
  %s8 = ssub.s32 1, %s6
  %s9 = scalar_select 0, %s8, %s6
  $region1: #{tpu_custom_call.1} parent=0
    #allocation2 [shape = 'u8[4096]{0}', space=vmem, size = 0x1000, scoped, tag = 'output window, operand 0, single buffered']
    #allocation3 [shape = 's32[1]{0}', space=sflag, size = 0x4, scoped, tag = 'scoped memory for tpu_custom_call.1']
    %10 = vsyncpa [#allocation3], 0
    // Predicated region
    $region2: #{tpu_custom_call.1} parent=1 // pred_check
      _
    $region3: #{tpu_custom_call.1} parent=1 // pred_check_branch
      %12 = sbr.rel (0) target = $region5
    $region4: #{tpu_custom_call.1} parent=1 // pred_region
      _
    $region5: #{tpu_custom_call.1} parent=1 // pred_fallthru
      _
    // Predicated region
    $region6: #{tpu_custom_call.1} parent=1 // pred_check
      _
    $region7: #{tpu_custom_call.1} parent=1 // pred_check_branch
      %14 = sbr.rel (0) target = $region9
    $region8: #{tpu_custom_call.1} parent=1 // pred_region
      _
    $region9: #{tpu_custom_call.1} parent=1 // pred_fallthru
      _
    // Predicated region
    $region10: #{tpu_custom_call.1} parent=1 // pred_check
      _
    $region11: #{tpu_custom_call.1} parent=1 // pred_check_branch
      %16 = sbr.rel (0) target = $region13
    $region12: #{tpu_custom_call.1} parent=1 // pred_region
      _
    $region13: #{tpu_custom_call.1} parent=1 // pred_fallthru
      _
    // Predicated region
    $region14: #{tpu_custom_call.1} parent=1 // pred_check
      _
    $region15: #{tpu_custom_call.1} parent=1 // pred_check_branch
      %18 = sbr.rel (0) target = $region17
    $region16: #{tpu_custom_call.1} parent=1 // pred_region
      _
    $region17: #{tpu_custom_call.1} parent=1 // pred_fallthru
      _
    // Predicated region
    $region18: #{tpu_custom_call.1} parent=1 // pred_check
      _
    $region19: #{tpu_custom_call.1} parent=1 // pred_check_branch
      %20 = sbr.rel (0) target = $region21
    $region20: #{tpu_custom_call.1} parent=1 // pred_region
      _
    $region21: #{tpu_custom_call.1} parent=1 // pred_fallthru
      _
    %v21 = vld [vmem:[%s0] sm:$0xff]
    %v22 = vld [vmem:[%s1] sm:$0xff]
    %v23 = vld [vmem:[%s2] sm:$0xff]
    %25 = vrot.lane.b32.xlu0 %v22, 10
    %v26 = vpop.permute.xlu0 %25
    %29 = vrot.lane.b32.xlu0 %v23, 20
    %v30 = vpop.permute.xlu0 %29
    %vm32 = vcmask 80896
    %v33 = vsel %vm32, %v21, %v26
    %vm34 = vcmask 162816
    %v35 = vsel %vm34, %v33, %v30
    %v36 = vld [vmem:[%s3] sm:$0xff]
    %v37 = vld [vmem:[%s3 + $0x8] sm:$0xff]
    %v38 = vld [vmem:[%s3 + $0x10] sm:$0xff]
    %v39 = vld [vmem:[%s3 + $0x18] sm:$0x3f]
    %v40 = vld [vmem:[%s4] sm:$0x1]
    %v42 = vlaneseq
    %v43 = vshrl.u32 %v42, 7
    %v44 = vsub.s32 0, %v43
    %v45 = vrot.slane %v40, %v44
    %vm47 = vcmask 244736
    %v49 = vsel %vm47, %v35, 0
    %vm51 = vcmask 1045504
    %v53 = vsel %vm51, %v39, 0
    %55 = vmatprep.subr.mxu0 0.0
    %56 = vmatpush1.msra.mxu0 %v36
    %57 = vmatprep.subr.mxu0 0.0
    %58 = vmatpush1.msra.mxu0 %v37
    %59 = vmatprep.subr.mxu0 0.0
    %60 = vmatpush1.msra.mxu0 %v38
    %61 = vmatprep.subr.mxu0 0.0
    %62 = vmatpush1.msra.mxu0 %v53
    %63 = vmatprep.subr.mxu0 0.0
    %64 = vmatpush1.msra.mxu0 0.0
    %65 = vmatprep.subr.mxu0 0.0
    %66 = vmatpush1.msra.mxu0 0.0
    %67 = vmatprep.subr.mxu0 0.0
    %68 = vmatpush1.msra.mxu0 0.0
    %69 = vmatprep.subr.mxu0 0.0
    %70 = vmatpush1.msra.mxu0 0.0
    %71 = vmatprep.subr.mxu0 0.0
    %72 = vmatpush1.msra.mxu0 0.0
    %73 = vmatprep.subr.mxu0 0.0
    %74 = vmatpush1.msra.mxu0 0.0
    %75 = vmatprep.subr.mxu0 0.0
    %76 = vmatpush1.msra.mxu0 0.0
    %77 = vmatprep.subr.mxu0 0.0
    %78 = vmatpush1.msra.mxu0 0.0
    %79 = vmatprep.subr.mxu0 0.0
    %80 = vmatpush1.msra.mxu0 0.0
    %81 = vmatprep.subr.mxu0 0.0
    %82 = vmatpush1.msra.mxu0 0.0
    %83 = vmatprep.subr.mxu0 0.0
    %84 = vmatpush1.msra.mxu0 0.0
    %85 = vmatprep.subr.mxu0 0.0
    %86 = vmatpush1.msra.mxu0 0.0
    %87 = vmatprep.subr.mxu0 0.0
    %88 = vmatpush1.msra.mxu0 0.0
    %89 = vmatprep.subr.mxu0 0.0
    %90 = vmatpush1.msra.mxu0 0.0
    %91 = vmatprep.subr.mxu0 0.0
    %92 = vmatpush1.msra.mxu0 0.0
    %93 = vmatprep.subr.mxu0 0.0
    %94 = vmatpush1.msra.mxu0 0.0
    %95 = vmatprep.subr.mxu0 0.0
    %96 = vmatpush1.msra.mxu0 0.0
    %97 = vmatprep.subr.mxu0 0.0
    %98 = vmatpush1.msra.mxu0 0.0
    %99 = vmatprep.subr.mxu0 0.0
    %100 = vmatpush1.msra.mxu0 0.0
    %101 = vmatprep.subr.mxu0 0.0
    %102 = vmatpush1.msra.mxu0 0.0
    %103 = vmatprep.subr.mxu0 0.0
    %104 = vmatpush1.msra.mxu0 0.0
    %105 = vmatprep.subr.mxu0 0.0
    %106 = vmatpush1.msra.mxu0 0.0
    %107 = vmatprep.subr.mxu0 0.0
    %108 = vmatpush1.msra.mxu0 0.0
    %109 = vmatprep.subr.mxu0 0.0
    %110 = vmatpush1.msra.mxu0 0.0
    %111 = vmatprep.subr.mxu0 0.0
    %112 = vmatpush1.msra.mxu0 0.0
    %113 = vmatprep.subr.mxu0 0.0
    %114 = vmatpush1.msra.mxu0 0.0
    %115 = vmatprep.subr.mxu0 0.0
    %116 = vmatpush1.msra.mxu0 0.0
    %117 = vmatprep.subr.mxu0 0.0
    %118 = vmatpush1.msra.mxu0 0.0
    %119 = vmatprep.mubr.f32.mxu0 0.0
    %120 = vmatmul.mubr.f32.gmra.mrb[0].mxu0 %v49
    %v121 = vpop.f32.mrb[0].mxu0
    %v122 = vadd.f32 %v45, %v121
    %v123 = vpop.f32.mrb[0].mxu0
    %124 = vdwg.mxu0
    %125 = vst.msk [vmem:[#allocation2] sm:$0xff] %vm32, %v122
    // Predicated region
    $region22: #{tpu_custom_call.1} parent=1 // pred_check
      _
    $region23: #{tpu_custom_call.1} parent=1 // pred_check_branch
      %127 = sbr.rel (0) target = $region25
    $region24: #{tpu_custom_call.1} parent=1 // pred_region
      %s129 = ssub.s32 128, 128
      %130 = vsyncadd [#allocation3], %s129
      %s132 = sshll.u32 [#allocation2], 4
      %s133 = int_to_ptr.vmem [resolvable:$true] %s132
      %135 = dma.vmem_to_hbm [thread:$0]  %s133, 128, %s5, [#allocation3]
    $region25: #{tpu_custom_call.1} parent=1 // pred_fallthru
      _
    // Predicated region
    $region26: #{tpu_custom_call.1} parent=1 // pred_check
      _
    $region27: #{tpu_custom_call.1} parent=1 // pred_check_branch
      %137 = sbr.rel (0) target = $region29
    $region28: #{tpu_custom_call.1} parent=1 // pred_region
      %138 = dma.done [#allocation3], 128
    $region29: #{tpu_custom_call.1} parent=1 // pred_fallthru
      _
    %139 = vsyncpa [#allocation3], 1

</llo_original>
